<compile_context>
chip_gen: v7x
topology: tpu7x:2x2x1
jax: 0.10.0
libtpu: 0.0.40
codegen_flags: <defaults>
</compile_context>

<pallas_src>
import jax
import jax.numpy as jnp
from jax.experimental import pallas as pl
from jax.experimental.pallas import tpu as pltpu


def _copy_kernel(r_ref, out_ref):
    # LRP for ReLU: relevance is passed through without modification.
    out_ref[...] = r_ref[...]


_LANE_CANDIDATES = (1024, 512, 256, 128)


def _choose_lane(total: int) -> int:
    """Pick the widest lane dim that divides `total` and leaves >= 8 rows."""
    for lane in _LANE_CANDIDATES:
        if total % lane == 0 and total // lane >= 8:
            return lane
    return 128


def relevance_propagation_nonlinearity(a: jax.Array, r: jax.Array) -> jax.Array:
    """Forward pass of RelevancePropagationNonLinearity: returns r unchanged."""
    assert a.shape == r.shape, "activation and relevance must share a shape"
    # The activation is irrelevant for this rule: do NOT DMA it (cuts HBM
    # traffic from 3x to 2x tensor size versus the previous kernel).
    del a

    orig_shape = r.shape
    dtype = r.dtype
    total = r.size
    itemsize = jnp.dtype(dtype).itemsize

    # Lane-dense 2-D layout: wide last dim -> unmasked, full-width vector stores.
    lane = _choose_lane(total)
    rows = pl.cdiv(total, lane)

    # Sublane multiple required by the (8,128) tiling rule (8 for 32-bit,
    # 16 for bf16, 32 for int8).
    sub = max(8, 32 // max(itemsize, 1))

    # ~1 MiB blocks: large enough to amortize the ~0.35 us/step grid overhead,
    # small enough that double-buffered in+out (~4 MiB total) fits comfortably
    # within every generation's default scoped VMEM (16/32/32 MiB v5e/v6e/v7x).
    target_bytes = 1 << 20
    block_rows = max(sub, (target_bytes // (lane * itemsize)) // sub * sub)
    if rows <= block_rows:
        block_rows = pl.cdiv(rows, sub) * sub  # single tile, rounded to sublane

    padded_rows = pl.cdiv(rows, block_rows) * block_rows
    padded_total = padded_rows * lane

    flat = r.reshape(-1)
    if padded_total != total:
        flat = jnp.pad(flat, (0, padded_total - total))
    r2 = flat.reshape(padded_rows, lane)

    grid = (padded_rows // block_rows,)
    out = pl.pallas_call(
        _copy_kernel,
        out_shape=jax.ShapeDtypeStruct((padded_rows, lane), dtype),
        grid=grid,
        in_specs=[pl.BlockSpec((block_rows, lane), lambda i: (i, 0))],
        out_specs=pl.BlockSpec((block_rows, lane), lambda i: (i, 0)),
        compiler_params=pltpu.CompilerParams(
            dimension_semantics=("parallel",),
        ),
    )(r2)

    out_flat = out.reshape(-1)
    if padded_total != total:
        out_flat = out_flat[:total]
    return out_flat.reshape(orig_shape)


if __name__ == "__main__":
    key = jax.random.PRNGKey(0)
    ka, kr = jax.random.split(key)
    # Small NCHW shapes: batch=2, channels=4, spatial=16x16.
    a = jax.random.normal(ka, (2, 4, 16, 16), dtype=jnp.float32)
    r = jax.random.normal(kr, (2, 4, 16, 16), dtype=jnp.float32)

    out = relevance_propagation_nonlinearity(a, r)
    out = jax.block_until_ready(out)

    assert out.shape == r.shape
    assert out.dtype == r.dtype
    assert bool(jnp.all(out == r))

    # Also check a non-128-divisible shape exercises the padded path correctly.
    r_odd = jax.random.normal(kr, (3, 5, 7, 11), dtype=jnp.float32)
    a_odd = jnp.zeros_like(r_odd)
    out_odd = jax.block_until_ready(
        relevance_propagation_nonlinearity(a_odd, r_odd))
    assert bool(jnp.all(out_odd == r_odd))

    print("KERNEL_OK")
</pallas_src>

<mosaic_0001>
module attributes {stable_mosaic.version = 11 : i64} {
  func.func @_copy_kernel(%arg0: i32, %arg1: memref<8x256xf32, #tpu.memory_space<vmem>>, %arg2: memref<8x256xf32, #tpu.memory_space<vmem>>) attributes {dimension_semantics = [#tpu.dimension_semantics<parallel>], iteration_bounds = array<i64: 1>, scalar_prefetch = 0 : i64, scratch_operands = 0 : i64, tpu.core_type = #tpu.core_type<tc>, window_params = [{transform_indices = @transform_0, window_bounds = array<i64: 8, 256>}, {transform_indices = @transform_1, window_bounds = array<i64: 8, 256>}]} {
    %c0 = arith.constant 0 : index
    %c0_0 = arith.constant 0 : index
    %0 = vector.load %arg1[%c0, %c0_0] : memref<8x256xf32, #tpu.memory_space<vmem>>, vector<8x256xf32>
    %c0_1 = arith.constant 0 : index
    %c0_2 = arith.constant 0 : index
    %1 = vector.load %arg2[%c0_1, %c0_2] : memref<8x256xf32, #tpu.memory_space<vmem>>, vector<8x256xf32>
    tpu.vector_store %arg2[%c0_1, %c0_2], %0 {strides = array<i32>} : memref<8x256xf32, #tpu.memory_space<vmem>>, vector<8x256xf32>,
    return
  }
  func.func @transform_0(%arg0: i32) -> (i32, i32) {
    %c0_i32 = arith.constant 0 : i32
    %c0_i32_0 = arith.constant 0 : i32
    return %arg0, %c0_i32 : i32, i32
  }
  func.func @transform_1(%arg0: i32) -> (i32, i32) {
    %c0_i32 = arith.constant 0 : i32
    %c0_i32_0 = arith.constant 0 : i32
    return %arg0, %c0_i32 : i32, i32
  }
}

</mosaic_0001>

<llo_original>
// kernel: tpu_custom_call.1
$region0: #{tpu_custom_call.1}
  #allocation0 [shape = 'u32[]', space=smem, size = 0x4, offset = 0x4, fixed_abs, tag = 'smem constant byte address 0x4 - core index']
  #allocation1 [shape = 'u32[144,128]{1,0:T(1,128)}', space=vmem, size = 0x12000, scoped, tag = 'internal scratch']
  %s0 = inlined_call_operand.hbm [shape: f32[8,256], index: 0, kind: input, shape index: {}]
  %s1 = inlined_call_operand.hbm [shape: f32[8,256], index: 1, kind: output, shape index: {}]
  %s2 = sld [smem:[#allocation0]]
  $region18: #{tpu_custom_call.1} parent=0
    _
  %s4 = ssub.s32 1, %s2
  %s5 = scalar_select 0, %s4, %s2
  $region1: #{tpu_custom_call.1} parent=0
    #allocation2 [shape = 'u8[8192]{0}', space=vmem, size = 0x2000, scoped, tag = 'input window, operand 0, single buffered']
    #allocation3 [shape = 's32[1]{0}', space=sflag, size = 0x4, scoped, tag = 'scoped memory for tpu_custom_call.1']
    #allocation4 [shape = 's32[1]{0}', space=sflag, size = 0x4, scoped, tag = 'scoped memory for tpu_custom_call.1']
    #allocation5 [shape = 'u8[8192]{0}', space=vmem, size = 0x2000, scoped, tag = 'output window, operand 0, single buffered']
    %6 = vsyncpa [#allocation3], 0
    %7 = vsyncpa [#allocation4], 0
    // Predicated region
    $region2: #{tpu_custom_call.1} parent=1 // pred_check
      _
    $region3: #{tpu_custom_call.1} parent=1 // pred_check_branch
      %9 = sbr.rel (0) target = $region5
    $region4: #{tpu_custom_call.1} parent=1 // pred_region
      %s11 = ssub.s32 256, 256
      %12 = vsyncadd [#allocation3], %s11
      %s14 = sshll.u32 [#allocation2], 4
      %s15 = int_to_ptr.vmem [resolvable:$true] %s14
      %17 = dma.hbm_to_vmem [thread:$0]  %s0, 256, %s15, [#allocation3]
    $region5: #{tpu_custom_call.1} parent=1 // pred_fallthru
      _
    // Predicated region
    $region6: #{tpu_custom_call.1} parent=1 // pred_check
      _
    $region7: #{tpu_custom_call.1} parent=1 // pred_check_branch
      %19 = sbr.rel (0) target = $region9
    $region8: #{tpu_custom_call.1} parent=1 // pred_region
      %20 = dma.done [#allocation3], 256
    $region9: #{tpu_custom_call.1} parent=1 // pred_fallthru
      _
    %v21 = vld [vmem:[#allocation2] sm:$0xff]
    %v22 = vld [vmem:[#allocation2 + $0x8] sm:$0xff]
    %23 = vst [vmem:[#allocation5] sm:$0xff] %v21
    %24 = vst [vmem:[#allocation5 + $0x8] sm:$0xff] %v22
    // Predicated region
    $region10: #{tpu_custom_call.1} parent=1 // pred_check
      _
    $region11: #{tpu_custom_call.1} parent=1 // pred_check_branch
      %26 = sbr.rel (0) target = $region13
    $region12: #{tpu_custom_call.1} parent=1 // pred_region
      %s28 = ssub.s32 256, 256
      %29 = vsyncadd [#allocation4], %s28
      %s31 = sshll.u32 [#allocation5], 4
      %s32 = int_to_ptr.vmem [resolvable:$true] %s31
      %34 = dma.vmem_to_hbm [thread:$0]  %s32, 256, %s1, [#allocation4]
    $region13: #{tpu_custom_call.1} parent=1 // pred_fallthru
      _
    // Predicated region
    $region14: #{tpu_custom_call.1} parent=1 // pred_check
      _
    $region15: #{tpu_custom_call.1} parent=1 // pred_check_branch
      %36 = sbr.rel (0) target = $region17
    $region16: #{tpu_custom_call.1} parent=1 // pred_region
      %37 = dma.done [#allocation4], 256
    $region17: #{tpu_custom_call.1} parent=1 // pred_fallthru
      _
    %38 = vsyncpa [#allocation3], 1
    %39 = vsyncpa [#allocation4], 1

</llo_original>
